<compile_context>
chip_gen: v6e
topology: v6e:2x2x1
jax: 0.10.0
libtpu: 0.0.40
codegen_flags: <defaults>
</compile_context>

<pallas_src>
import jax
import jax.numpy as jnp
from jax.experimental import pallas as pl
from jax.experimental.pallas import tpu as pltpu


def _round_up(x, m):
    return (x + m - 1) // m * m


def _lora_linear_kernel(x_ref, wt_ref, b_ref, a_ref, bmat_ref, o_ref,
                        acc_ref, xa_ref):
    # x_ref    : (tm, tk)   block (i, k)
    # wt_ref   : (tk, tn)   block (k, j)   -- W already transposed to (in, out)
    # b_ref    : (1,  tn)   block (0, j)
    # a_ref    : (tk, R)    block (k, 0)   -- R = rank padded to 128 lanes
    # bmat_ref : (R,  tn)   block (0, j)   -- scaling already folded in
    # o_ref    : (tm, tn)   block (i, j)
    # acc_ref  : (tm, tn) f32 scratch      -- base GEMM accumulator
    # xa_ref   : (tm, R)  f32 scratch      -- x @ A, carried across the j axis
    j = pl.program_id(1)
    k = pl.program_id(2)

    @pl.when(k == 0)
    def _():
        acc_ref[...] = jnp.zeros_like(acc_ref)

    x = x_ref[...]

    # Base GEMM partial product on the MXU, f32 accumulation.
    acc_ref[...] += jnp.dot(x, wt_ref[...], preferred_element_type=jnp.float32)

    # LoRA down-projection (x @ A): only depends on the M tile, so compute it
    # once per i on the j == 0 sweep and reuse the persistent scratch afterwards.
    @pl.when(jnp.logical_and(j == 0, k == 0))
    def _():
        xa_ref[...] = jnp.zeros_like(xa_ref)

    @pl.when(j == 0)
    def _():
        xa_ref[...] += jnp.dot(x, a_ref[...], preferred_element_type=jnp.float32)

    # Finalize on the last K step: LoRA up-projection, bias add, store.
    @pl.when(k == pl.num_programs(2) - 1)
    def _():
        lora = jnp.dot(xa_ref[...], bmat_ref[...],
                       preferred_element_type=jnp.float32)
        o_ref[...] = (acc_ref[...] + b_ref[...] + lora).astype(o_ref.dtype)


def lora_linear(x, weight, bias, lora_A, lora_B, scaling=1.0,
                *, tm=256, tn=256, tk=512):
    """LoRALinear forward: x (..., in_features) -> (..., out_features)."""
    out_features, in_features = weight.shape
    rank = lora_A.shape[1]
    lead_shape = x.shape[:-1]

    x2d = x.reshape(-1, in_features)
    M, K, N = x2d.shape[0], in_features, out_features

    # One-time host-side layout prep: transpose W, fold scaling into B.
    w_t = weight.T                         # (K, N)  -- lane axis = out_features
    b_scaled = lora_B * scaling            # (rank, N)
    bias2d = bias.reshape(1, N)

    # Clamp tiles for small problems, keep (8, 128) alignment.
    tm = min(tm, _round_up(M, 8))
    tn = min(tn, _round_up(N, 128))
    tk = min(tk, _round_up(K, 128))
    R = 128                                # rank padded to a full lane width

    Mp, Np, Kp = _round_up(M, tm), _round_up(N, tn), _round_up(K, tk)

    dtype = x.dtype
    x_p = jnp.zeros((Mp, Kp), dtype).at[:M, :K].set(x2d)
    w_p = jnp.zeros((Kp, Np), w_t.dtype).at[:K, :N].set(w_t)
    bias_p = jnp.zeros((1, Np), bias2d.dtype).at[:, :N].set(bias2d)
    a_p = jnp.zeros((Kp, R), lora_A.dtype).at[:K, :rank].set(lora_A)
    bmat_p = jnp.zeros((R, Np), b_scaled.dtype).at[:rank, :N].set(b_scaled)

    grid = (Mp // tm, Np // tn, Kp // tk)

    itemsize = jnp.dtype(dtype).itemsize
    vmem_need = (2 * (tm * tk + tk * tn + tn + tk * R + R * tn + tm * tn) * itemsize
                 + (tm * tn + tm * R) * 4)
    vmem_limit = int(min(max(2 * vmem_need, 16 << 20), 48 << 20))

    cost = pl.CostEstimate(
        flops=2 * Mp * Kp * Np + 2 * Mp * Kp * R + 2 * Mp * R * Np,
        transcendentals=0,
        bytes_accessed=(x_p.size + w_p.size + bias_p.size + a_p.size
                        + bmat_p.size + Mp * Np) * itemsize,
    )

    out = pl.pallas_call(
        _lora_linear_kernel,
        out_shape=jax.ShapeDtypeStruct((Mp, Np), dtype),
        grid_spec=pltpu.PrefetchScalarGridSpec(
            num_scalar_prefetch=0,
            grid=grid,
            in_specs=[
                pl.BlockSpec((tm, tk), lambda i, j, k: (i, k)),   # x
                pl.BlockSpec((tk, tn), lambda i, j, k: (k, j)),   # W.T
                pl.BlockSpec((1, tn), lambda i, j, k: (0, j)),    # bias
                # A is only consumed on the j == 0 sweep; pin its block index
                # for j > 0 so the pipeline does not re-fetch unused tiles.
                pl.BlockSpec((tk, R),
                             lambda i, j, k: (jnp.where(j == 0, k, 0), 0)),
                pl.BlockSpec((R, tn), lambda i, j, k: (0, j)),    # scaled B
            ],
            out_specs=pl.BlockSpec((tm, tn), lambda i, j, k: (i, j)),
            scratch_shapes=[
                pltpu.VMEM((tm, tn), jnp.float32),   # base accumulator
                pltpu.VMEM((tm, R), jnp.float32),    # xa = x @ A carry
            ],
        ),
        compiler_params=pltpu.CompilerParams(
            dimension_semantics=("parallel", "arbitrary", "arbitrary"),
            vmem_limit_bytes=vmem_limit,
        ),
        cost_estimate=cost,
    )(x_p, w_p, bias_p, a_p, bmat_p)

    return out[:M, :N].reshape(*lead_shape, N)


def _reference(x, weight, bias, lora_A, lora_B, scaling):
    return x @ weight.T + bias + scaling * ((x @ lora_A) @ lora_B)


if __name__ == "__main__":
    key = jax.random.PRNGKey(0)

    # --- Test 1: toy shapes matching the module defaults (single-tile grid) ---
    batch, seq, in_f, out_f, rank = 2, 8, 32, 64, 4
    k1, k2, k3, k4, k5, key = jax.random.split(key, 6)
    x = jax.random.normal(k1, (batch, seq, in_f), dtype=jnp.float32)
    weight = jax.random.normal(k2, (out_f, in_f), dtype=jnp.float32) * 0.05
    bias = jax.random.normal(k3, (out_f,), dtype=jnp.float32) * 0.05
    lora_A = jax.random.normal(k4, (in_f, rank), dtype=jnp.float32) / rank
    lora_B = jax.random.normal(k5, (rank, out_f), dtype=jnp.float32) / rank
    scaling = 1.0

    out = jax.block_until_ready(lora_linear(x, weight, bias, lora_A, lora_B, scaling))
    ref = _reference(x, weight, bias, lora_A, lora_B, scaling)
    assert out.shape == (batch, seq, out_f)
    assert jnp.allclose(out, ref, atol=1e-3, rtol=1e-3), "mismatch vs reference (test 1)"

    # --- Test 2: multi-tile grid (exercises i/j/k tiling, the j>0 xa reuse
    #             path, padding, and scaling folding) with small tiles ---
    batch, seq, in_f, out_f, rank = 2, 24, 256, 320, 4
    k1, k2, k3, k4, k5, key = jax.random.split(key, 6)
    x = jax.random.normal(k1, (batch, seq, in_f), dtype=jnp.float32)
    weight = jax.random.normal(k2, (out_f, in_f), dtype=jnp.float32) * 0.02
    bias = jax.random.normal(k3, (out_f,), dtype=jnp.float32) * 0.02
    lora_A = jax.random.normal(k4, (in_f, rank), dtype=jnp.float32) / rank
    lora_B = jax.random.normal(k5, (rank, out_f), dtype=jnp.float32) / rank
    scaling = 0.5

    out = jax.block_until_ready(
        lora_linear(x, weight, bias, lora_A, lora_B, scaling, tm=16, tn=128, tk=128))
    ref = _reference(x, weight, bias, lora_A, lora_B, scaling)
    assert out.shape == (batch, seq, out_f)
    assert jnp.allclose(out, ref, atol=1e-3, rtol=1e-3), "mismatch vs reference (test 2)"

    print("KERNEL_OK")
</pallas_src>

<mosaic_0001>
module attributes {stable_mosaic.version = 11 : i64} {
  func.func @_lora_linear_kernel(%arg0: i32, %arg1: i32, %arg2: i32, %arg3: memref<16x128xf32, #tpu.memory_space<vmem>>, %arg4: memref<128x128xf32, #tpu.memory_space<vmem>>, %arg5: memref<1x128xf32, #tpu.memory_space<vmem>>, %arg6: memref<128x128xf32, #tpu.memory_space<vmem>>, %arg7: memref<128x128xf32, #tpu.memory_space<vmem>>, %arg8: memref<16x128xf32, #tpu.memory_space<vmem>>, %arg9: memref<16x128xf32, #tpu.memory_space<vmem>>, %arg10: memref<16x128xf32, #tpu.memory_space<vmem>>) attributes {dimension_semantics = [#tpu.dimension_semantics<parallel>, #tpu.dimension_semantics<arbitrary>, #tpu.dimension_semantics<arbitrary>], iteration_bounds = array<i64: 1, 1, 1>, scalar_prefetch = 0 : i64, scratch_operands = 2 : i64, tpu.core_type = #tpu.core_type<tc>, window_params = [{transform_indices = @transform_0, window_bounds = array<i64: 16, 128>}, {transform_indices = @transform_1, window_bounds = array<i64: 128, 128>}, {transform_indices = @transform_2, window_bounds = array<i64: 1, 128>}, {transform_indices = @transform_3, window_bounds = array<i64: 128, 128>}, {transform_indices = @transform_4, window_bounds = array<i64: 128, 128>}, {transform_indices = @transform_5, window_bounds = array<i64: 16, 128>}]} {
    %c0_i32 = arith.constant 0 : i32
    %0 = arith.cmpi eq, %arg2, %c0_i32 : i32
    %1 = arith.extui %0 : i1 to i32
    %c0_i32_0 = arith.constant 0 : i32
    %2 = arith.cmpi ne, %1, %c0_i32_0 : i32
    scf.if %2 {
      %cst_15 = arith.constant 0.000000e+00 : f32
      %20 = vector.broadcast %cst_15 : f32 to vector<16x128xf32>
      %c0_16 = arith.constant 0 : index
      %c0_17 = arith.constant 0 : index
      %21 = vector.load %arg9[%c0_16, %c0_17] : memref<16x128xf32, #tpu.memory_space<vmem>>, vector<16x128xf32>
      tpu.vector_store %arg9[%c0_16, %c0_17], %20 {strides = array<i32>} : memref<16x128xf32, #tpu.memory_space<vmem>>, vector<16x128xf32>,
    } else {
    }
    %c0 = arith.constant 0 : index
    %c0_1 = arith.constant 0 : index
    %3 = vector.load %arg3[%c0, %c0_1] : memref<16x128xf32, #tpu.memory_space<vmem>>, vector<16x128xf32>
    %c0_2 = arith.constant 0 : index
    %c0_3 = arith.constant 0 : index
    %4 = vector.load %arg9[%c0_2, %c0_3] : memref<16x128xf32, #tpu.memory_space<vmem>>, vector<16x128xf32>
    %c0_4 = arith.constant 0 : index
    %c0_5 = arith.constant 0 : index
    %5 = vector.load %arg4[%c0_4, %c0_5] : memref<128x128xf32, #tpu.memory_space<vmem>>, vector<128x128xf32>
    %cst = arith.constant dense<0.000000e+00> : vector<16x128xf32>
    %6 = tpu.matmul %3, %5, %cst {dimension_numbers = #tpu.dot_dimension_numbers<[1], [0], [0], [1], [0, 0, 1, 1], [], []>} : vector<16x128xf32>, vector<128x128xf32>, vector<16x128xf32> -> vector<16x128xf32>
    %7 = arith.addf %4, %6 : vector<16x128xf32>
    %c0_6 = arith.constant 0 : index
    %c0_7 = arith.constant 0 : index
    %8 = vector.load %arg9[%c0_6, %c0_7] : memref<16x128xf32, #tpu.memory_space<vmem>>, vector<16x128xf32>
    tpu.vector_store %arg9[%c0_6, %c0_7], %7 {strides = array<i32>} : memref<16x128xf32, #tpu.memory_space<vmem>>, vector<16x128xf32>,
    %c0_i32_8 = arith.constant 0 : i32
    %9 = arith.cmpi eq, %arg1, %c0_i32_8 : i32
    %c0_i32_9 = arith.constant 0 : i32
    %10 = arith.cmpi eq, %arg2, %c0_i32_9 : i32
    %11 = arith.andi %9, %10 : i1
    %12 = arith.extui %11 : i1 to i32
    %c0_i32_10 = arith.constant 0 : i32
    %13 = arith.cmpi ne, %12, %c0_i32_10 : i32
    scf.if %13 {
      %cst_15 = arith.constant 0.000000e+00 : f32
      %20 = vector.broadcast %cst_15 : f32 to vector<16x128xf32>
      %c0_16 = arith.constant 0 : index
      %c0_17 = arith.constant 0 : index
      %21 = vector.load %arg10[%c0_16, %c0_17] : memref<16x128xf32, #tpu.memory_space<vmem>>, vector<16x128xf32>
      tpu.vector_store %arg10[%c0_16, %c0_17], %20 {strides = array<i32>} : memref<16x128xf32, #tpu.memory_space<vmem>>, vector<16x128xf32>,
    } else {
    }
    %c0_i32_11 = arith.constant 0 : i32
    %14 = arith.cmpi eq, %arg1, %c0_i32_11 : i32
    %15 = arith.extui %14 : i1 to i32
    %c0_i32_12 = arith.constant 0 : i32
    %16 = arith.cmpi ne, %15, %c0_i32_12 : i32
    scf.if %16 {
      %c0_15 = arith.constant 0 : index
      %c0_16 = arith.constant 0 : index
      %20 = vector.load %arg10[%c0_15, %c0_16] : memref<16x128xf32, #tpu.memory_space<vmem>>, vector<16x128xf32>
      %c0_17 = arith.constant 0 : index
      %c0_18 = arith.constant 0 : index
      %21 = vector.load %arg6[%c0_17, %c0_18] : memref<128x128xf32, #tpu.memory_space<vmem>>, vector<128x128xf32>
      %cst_19 = arith.constant dense<0.000000e+00> : vector<16x128xf32>
      %22 = tpu.matmul %3, %21, %cst_19 {dimension_numbers = #tpu.dot_dimension_numbers<[1], [0], [0], [1], [0, 0, 1, 1], [], []>} : vector<16x128xf32>, vector<128x128xf32>, vector<16x128xf32> -> vector<16x128xf32>
      %23 = arith.addf %20, %22 : vector<16x128xf32>
      %c0_20 = arith.constant 0 : index
      %c0_21 = arith.constant 0 : index
      %24 = vector.load %arg10[%c0_20, %c0_21] : memref<16x128xf32, #tpu.memory_space<vmem>>, vector<16x128xf32>
      tpu.vector_store %arg10[%c0_20, %c0_21], %23 {strides = array<i32>} : memref<16x128xf32, #tpu.memory_space<vmem>>, vector<16x128xf32>,
    } else {
    }
    %c0_i32_13 = arith.constant 0 : i32
    %17 = arith.cmpi eq, %arg2, %c0_i32_13 : i32
    %18 = arith.extui %17 : i1 to i32
    %c0_i32_14 = arith.constant 0 : i32
    %19 = arith.cmpi ne, %18, %c0_i32_14 : i32
    scf.if %19 {
      %c0_15 = arith.constant 0 : index
      %c0_16 = arith.constant 0 : index
      %20 = vector.load %arg10[%c0_15, %c0_16] : memref<16x128xf32, #tpu.memory_space<vmem>>, vector<16x128xf32>
      %c0_17 = arith.constant 0 : index
      %c0_18 = arith.constant 0 : index
      %21 = vector.load %arg7[%c0_17, %c0_18] : memref<128x128xf32, #tpu.memory_space<vmem>>, vector<128x128xf32>
      %cst_19 = arith.constant dense<0.000000e+00> : vector<16x128xf32>
      %22 = tpu.matmul %20, %21, %cst_19 {dimension_numbers = #tpu.dot_dimension_numbers<[1], [0], [0], [1], [0, 0, 1, 1], [], []>} : vector<16x128xf32>, vector<128x128xf32>, vector<16x128xf32> -> vector<16x128xf32>
      %c0_20 = arith.constant 0 : index
      %c0_21 = arith.constant 0 : index
      %23 = vector.load %arg9[%c0_20, %c0_21] : memref<16x128xf32, #tpu.memory_space<vmem>>, vector<16x128xf32>
      %c0_22 = arith.constant 0 : index
      %c0_23 = arith.constant 0 : index
      %24 = vector.load %arg5[%c0_22, %c0_23] : memref<1x128xf32, #tpu.memory_space<vmem>>, vector<1x128xf32>
      %25 = vector.broadcast %24 : vector<1x128xf32> to vector<16x128xf32>
      %26 = arith.addf %23, %25 : vector<16x128xf32>
      %27 = arith.addf %26, %22 : vector<16x128xf32>
      %c0_24 = arith.constant 0 : index
      %c0_25 = arith.constant 0 : index
      %28 = vector.load %arg8[%c0_24, %c0_25] : memref<16x128xf32, #tpu.memory_space<vmem>>, vector<16x128xf32>
      tpu.vector_store %arg8[%c0_24, %c0_25], %27 {strides = array<i32>} : memref<16x128xf32, #tpu.memory_space<vmem>>, vector<16x128xf32>,
    } else {
    }
    return
  }
  func.func @transform_0(%arg0: i32, %arg1: i32, %arg2: i32) -> (i32, i32) {
    %c0_i32 = arith.constant 0 : i32
    return %arg0, %arg2 : i32, i32
  }
  func.func @transform_1(%arg0: i32, %arg1: i32, %arg2: i32) -> (i32, i32) {
    %c0_i32 = arith.constant 0 : i32
    return %arg2, %arg1 : i32, i32
  }
  func.func @transform_2(%arg0: i32, %arg1: i32, %arg2: i32) -> (i32, i32) {
    %c0_i32 = arith.constant 0 : i32
    %c0_i32_0 = arith.constant 0 : i32
    return %c0_i32, %arg1 : i32, i32
  }
  func.func @transform_3(%arg0: i32, %arg1: i32, %arg2: i32) -> (i32, i32) {
    %c0_i32 = arith.constant 0 : i32
    %0 = arith.cmpi eq, %arg1, %c0_i32 : i32
    %c0_i32_0 = arith.constant 0 : i32
    %1 = arith.select %0, %arg2, %c0_i32_0 : i32
    %c0_i32_1 = arith.constant 0 : i32
    %c0_i32_2 = arith.constant 0 : i32
    return %1, %c0_i32_1 : i32, i32
  }
  func.func @transform_4(%arg0: i32, %arg1: i32, %arg2: i32) -> (i32, i32) {
    %c0_i32 = arith.constant 0 : i32
    %c0_i32_0 = arith.constant 0 : i32
    return %c0_i32, %arg1 : i32, i32
  }
  func.func @transform_5(%arg0: i32, %arg1: i32, %arg2: i32) -> (i32, i32) {
    %c0_i32 = arith.constant 0 : i32
    return %arg0, %arg1 : i32, i32
  }
}

</mosaic_0001>

<llo_original>
// kernel: tpu_custom_call.1
$region0: #{tpu_custom_call.1}
  #allocation0 [shape = 'u32[]', space=smem, size = 0x4, offset = 0x4, fixed_abs, tag = 'smem constant byte address 0x4 - core index']
  #allocation1 [shape = 'u32[144,128]{1,0:T(1,128)}', space=vmem, size = 0x12000, scoped, tag = 'internal scratch']
  #allocation2 [shape = 'f32[16,128]{1,0:T(8,128)}', space=vmem, size = 0x2000, scoped, tag = 'scratch operand']
  #allocation3 [shape = 'f32[16,128]{1,0:T(8,128)}', space=vmem, size = 0x2000, scoped, tag = 'scratch operand']
  %s0 = inlined_call_operand.hbm [shape: f32[16,128], index: 0, kind: input, shape index: {}]
  %s1 = inlined_call_operand.hbm [shape: f32[128,128], index: 1, kind: input, shape index: {}]
  %s2 = inlined_call_operand.vmem [shape: f32[1,128], index: 2, kind: input, shape index: {}]
  %s3 = inlined_call_operand.hbm [shape: f32[128,128], index: 3, kind: input, shape index: {}]
  %s4 = inlined_call_operand.hbm [shape: f32[128,128], index: 4, kind: input, shape index: {}]
  %s5 = inlined_call_operand.hbm [shape: f32[16,128], index: 5, kind: output, shape index: {}]
  %s6 = sld [smem:[#allocation0]]
  $region62: #{tpu_custom_call.1} parent=0
    _
  %s8 = ssub.s32 1, %s6
  %s9 = scalar_select 0, %s8, %s6
  $region1: #{tpu_custom_call.1} parent=0
    #allocation4 [shape = 'u8[8192]{0}', space=vmem, size = 0x2000, scoped, tag = 'input window, operand 0, single buffered']
    #allocation5 [shape = 's32[1]{0}', space=sflag, size = 0x4, scoped, tag = 'scoped memory for tpu_custom_call.1']
    #allocation6 [shape = 's32[1]{0}', space=sflag, size = 0x4, scoped, tag = 'scoped memory for tpu_custom_call.1']
    #allocation7 [shape = 'u8[65536]{0}', space=vmem, size = 0x10000, scoped, tag = 'input window, operand 1, single buffered']
    #allocation8 [shape = 's32[1]{0}', space=sflag, size = 0x4, scoped, tag = 'scoped memory for tpu_custom_call.1']
    #allocation9 [shape = 'u8[65536]{0}', space=vmem, size = 0x10000, scoped, tag = 'input window, operand 3, single buffered']
    #allocation10 [shape = 'u8[65536]{0}', space=vmem, size = 0x10000, scoped, tag = 'input window, operand 4, single buffered']
    #allocation11 [shape = 's32[1]{0}', space=sflag, size = 0x4, scoped, tag = 'scoped memory for tpu_custom_call.1']
    #allocation12 [shape = 'u8[8192]{0}', space=vmem, size = 0x2000, scoped, tag = 'output window, operand 0, single buffered']
    %10 = vsyncpa [#allocation5], 0
    %11 = vsyncpa [#allocation8], 0
    %12 = vsyncpa [#allocation11], 0
    %13 = vsyncpa [#allocation6], 0
    // Predicated region
    $region2: #{tpu_custom_call.1} parent=1 // pred_check
      _
    $region3: #{tpu_custom_call.1} parent=1 // pred_check_branch
      %15 = sbr.rel (0) target = $region5
    $region4: #{tpu_custom_call.1} parent=1 // pred_region
      %s17 = ssub.s32 256, 256
      %18 = vsyncadd [#allocation5], %s17
      %s19 = sshll.u32 [#allocation4], 4
      %s20 = int_to_ptr.vmem [resolvable:$true] %s19
      %25 = dma.hbm_to_vmem [thread:$0]  %s0, 256, %s20, [#allocation5], 128, 128, 8
    $region5: #{tpu_custom_call.1} parent=1 // pred_fallthru
      _
    // Predicated region
    $region6: #{tpu_custom_call.1} parent=1 // pred_check
      _
    $region7: #{tpu_custom_call.1} parent=1 // pred_check_branch
      %27 = sbr.rel (0) target = $region9
    $region8: #{tpu_custom_call.1} parent=1 // pred_region
      %s29 = ssub.s32 2048, 2048
      %30 = vsyncadd [#allocation8], %s29
      %s31 = sshll.u32 [#allocation7], 4
      %s32 = int_to_ptr.vmem [resolvable:$true] %s31
      %37 = dma.hbm_to_vmem [thread:$0]  %s1, 2048, %s32, [#allocation8], 128, 128, 8
    $region9: #{tpu_custom_call.1} parent=1 // pred_fallthru
      _
    // Predicated region
    $region10: #{tpu_custom_call.1} parent=1 // pred_check
      _
    $region11: #{tpu_custom_call.1} parent=1 // pred_check_branch
      %39 = sbr.rel (0) target = $region13
    $region12: #{tpu_custom_call.1} parent=1 // pred_region
      _
    $region13: #{tpu_custom_call.1} parent=1 // pred_fallthru
      _
    // Predicated region
    $region14: #{tpu_custom_call.1} parent=1 // pred_check
      _
    $region15: #{tpu_custom_call.1} parent=1 // pred_check_branch
      %41 = sbr.rel (0) target = $region17
    $region16: #{tpu_custom_call.1} parent=1 // pred_region
      %p42 = scmp.eq.s32.totalorder 0, 0
      %s43 = scalar_select %p42, 0, 0
      %s44 = smul.u32 16, %s43
      %s46 = ssub.s32 2048, 2048
      %47 = vsyncadd [#allocation8], %s46
      %s48 = smul.addr %s44, 128
      %s49 = scalar_lea.hbm %s3, %s48
      %s50 = sshll.u32 [#allocation9], 4
      %s51 = int_to_ptr.vmem [resolvable:$true] %s50
      %56 = dma.hbm_to_vmem [thread:$0]  %s49, 2048, %s51, [#allocation8], 128, 128, 8
    $region17: #{tpu_custom_call.1} parent=1 // pred_fallthru
      _
    // Predicated region
    $region18: #{tpu_custom_call.1} parent=1 // pred_check
      _
    $region19: #{tpu_custom_call.1} parent=1 // pred_check_branch
      %58 = sbr.rel (0) target = $region21
    $region20: #{tpu_custom_call.1} parent=1 // pred_region
      %s60 = ssub.s32 2048, 2048
      %61 = vsyncadd [#allocation11], %s60
      %s62 = sshll.u32 [#allocation10], 4
      %s63 = int_to_ptr.vmem [resolvable:$true] %s62
      %68 = dma.hbm_to_vmem [thread:$0]  %s4, 2048, %s63, [#allocation11], 128, 128, 8
    $region21: #{tpu_custom_call.1} parent=1 // pred_fallthru
      _
    // Predicated region
    $region22: #{tpu_custom_call.1} parent=1 // pred_check
      _
    $region23: #{tpu_custom_call.1} parent=1 // pred_check_branch
      %70 = sbr.rel (0) target = $region25
    $region24: #{tpu_custom_call.1} parent=1 // pred_region
      %71 = dma.done [#allocation5], 256
    $region25: #{tpu_custom_call.1} parent=1 // pred_fallthru
      _
    // Predicated region
    $region26: #{tpu_custom_call.1} parent=1 // pred_check
      _
    $region27: #{tpu_custom_call.1} parent=1 // pred_check_branch
      %73 = sbr.rel (0) target = $region29
    $region28: #{tpu_custom_call.1} parent=1 // pred_region
      %74 = dma.done [#allocation8], 2048
    $region29: #{tpu_custom_call.1} parent=1 // pred_fallthru
      _
    // Predicated region
    $region30: #{tpu_custom_call.1} parent=1 // pred_check
      _
    $region31: #{tpu_custom_call.1} parent=1 // pred_check_branch
      %76 = sbr.rel (0) target = $region33
    $region32: #{tpu_custom_call.1} parent=1 // pred_region
      %77 = dma.done [#allocation8], 2048
    $region33: #{tpu_custom_call.1} parent=1 // pred_fallthru
      _
    // Predicated region
    $region34: #{tpu_custom_call.1} parent=1 // pred_check
      _
    $region35: #{tpu_custom_call.1} parent=1 // pred_check_branch
      %79 = sbr.rel (0) target = $region37
    $region36: #{tpu_custom_call.1} parent=1 // pred_region
      %80 = dma.done [#allocation11], 2048
    $region37: #{tpu_custom_call.1} parent=1 // pred_fallthru
      _
    %p81 = scmp.eq.s32.totalorder 0, 0
    %s82 = scalar_select %p81, 0, 0
    %s83 = smul.u32 16, %s82
    %p84 = scmp.eq.s32.totalorder 0, 0
    // Predicated region
    $region38: #{tpu_custom_call.1} parent=1 // pred_check
      %p85 = pneg %p84
    $region39: #{tpu_custom_call.1} parent=1 // pred_check_branch
      %87 = sbr.rel (%p85) target = $region41
    $region40: #{tpu_custom_call.1} parent=1 // pred_region
      %88 = vst [vmem:[#allocation2] sm:$0xff] 0.0
      %89 = vst [vmem:[#allocation2 + $0x8] sm:$0xff] 0.0
    $region41: #{tpu_custom_call.1} parent=1 // pred_fallthru
      _
    %v90 = vld [vmem:[#allocation4] sm:$0xff]
    %v91 = vld [vmem:[#allocation4 + $0x8] sm:$0xff]
    %v92 = vld [vmem:[#allocation2] sm:$0xff]
    %v93 = vld [vmem:[#allocation2 + $0x8] sm:$0xff]
    %v94 = vld [vmem:[#allocation7] sm:$0xff]
    %v95 = vld [vmem:[#allocation7 + $0x8] sm:$0xff]
    %v96 = vld [vmem:[#allocation7 + $0x10] sm:$0xff]
    %v97 = vld [vmem:[#allocation7 + $0x18] sm:$0xff]
    %v98 = vld [vmem:[#allocation7 + $0x20] sm:$0xff]
    %v99 = vld [vmem:[#allocation7 + $0x28] sm:$0xff]
    %v100 = vld [vmem:[#allocation7 + $0x30] sm:$0xff]
    %v101 = vld [vmem:[#allocation7 + $0x38] sm:$0xff]
    %v102 = vld [vmem:[#allocation7 + $0x40] sm:$0xff]
    %v103 = vld [vmem:[#allocation7 + $0x48] sm:$0xff]
    %v104 = vld [vmem:[#allocation7 + $0x50] sm:$0xff]
    %v105 = vld [vmem:[#allocation7 + $0x58] sm:$0xff]
    %v106 = vld [vmem:[#allocation7 + $0x60] sm:$0xff]
    %v107 = vld [vmem:[#allocation7 + $0x68] sm:$0xff]
    %v108 = vld [vmem:[#allocation7 + $0x70] sm:$0xff]
    %v109 = vld [vmem:[#allocation7 + $0x78] sm:$0xff]
    %110 = vmatprep.subr.mxu0 0.0
    %111 = vmatpush1.msra.mxu0 %v109
    %112 = vmatprep.subr.mxu0 0.0
    %113 = vmatpush1.msra.mxu0 %v108
    %114 = vmatprep.subr.mxu0 0.0
    %115 = vmatpush1.msra.mxu0 %v107
    %116 = vmatprep.subr.mxu0 0.0
    %117 = vmatpush1.msra.mxu0 %v106
    %118 = vmatprep.subr.mxu0 0.0
    %119 = vmatpush1.msra.mxu0 %v105
    %120 = vmatprep.subr.mxu0 0.0
    %121 = vmatpush1.msra.mxu0 %v104
    %122 = vmatprep.subr.mxu0 0.0
    %123 = vmatpush1.msra.mxu0 %v103
    %124 = vmatprep.subr.mxu0 0.0
    %125 = vmatpush1.msra.mxu0 %v102
    %126 = vmatprep.subr.mxu0 0.0
    %127 = vmatpush1.msra.mxu0 %v101
    %128 = vmatprep.subr.mxu0 0.0
    %129 = vmatpush1.msra.mxu0 %v100
    %130 = vmatprep.subr.mxu0 0.0
    %131 = vmatpush1.msra.mxu0 %v99
    %132 = vmatprep.subr.mxu0 0.0
    %133 = vmatpush1.msra.mxu0 %v98
    %134 = vmatprep.subr.mxu0 0.0
    %135 = vmatpush1.msra.mxu0 %v97
    %136 = vmatprep.subr.mxu0 0.0
    %137 = vmatpush1.msra.mxu0 %v96
    %138 = vmatprep.subr.mxu0 0.0
    %139 = vmatpush1.msra.mxu0 %v95
    %140 = vmatprep.subr.mxu0 0.0
    %141 = vmatpush1.msra.mxu0 %v94
    %142 = vmatprep.subr.mxu0 0.0
    %143 = vmatpush2.msra.mxu0 0.0
    %144 = vmatprep.subr.mxu0 0.0
    %145 = vmatpush2.msra.mxu0 0.0
    %146 = vmatprep.subr.mxu0 0.0
    %147 = vmatpush2.msra.mxu0 0.0
    %148 = vmatprep.subr.mxu0 0.0
    %149 = vmatpush2.msra.mxu0 0.0
    %150 = vmatprep.subr.mxu0 0.0
    %151 = vmatpush2.msra.mxu0 0.0
    %152 = vmatprep.subr.mxu0 0.0
    %153 = vmatpush2.msra.mxu0 0.0
    %154 = vmatprep.subr.mxu0 0.0
    %155 = vmatpush2.msra.mxu0 0.0
    %156 = vmatprep.subr.mxu0 0.0
    %157 = vmatpush2.msra.mxu0 0.0
    %158 = vmatprep.subr.mxu0 0.0
    %159 = vmatpush2.msra.mxu0 0.0
    %160 = vmatprep.subr.mxu0 0.0
    %161 = vmatpush2.msra.mxu0 0.0
    %162 = vmatprep.subr.mxu0 0.0
    %163 = vmatpush2.msra.mxu0 0.0
    %164 = vmatprep.subr.mxu0 0.0
    %165 = vmatpush2.msra.mxu0 0.0
    %166 = vmatprep.subr.mxu0 0.0
    %167 = vmatpush2.msra.mxu0 0.0
    %168 = vmatprep.subr.mxu0 0.0
    %169 = vmatpush2.msra.mxu0 0.0
    %170 = vmatprep.subr.mxu0 0.0
    %171 = vmatpush2.msra.mxu0 0.0
    %172 = vmatprep.subr.mxu0 0.0
    %173 = vmatpush2.msra.mxu0 0.0
    %174 = vmatprep.mubr.f32.mxu0 0.0
    %175 = vmatmul.mubr.f32.gmra.mxu0 %v90
    %v176 = vpop.f32.mrf.mxu0
    %v177 = vadd.f32 0.0, %v176
    %v178 = vpop.f32.mrf.mxu0
    %179 = vmatprep.mubr.f32.mxu0 0.0
    %180 = vmatmul.mubr.f32.gmra.mxu0 %v91
    %v181 = vpop.f32.mrf.mxu0
    %v182 = vadd.f32 0.0, %v181
    %v183 = vpop.f32.mrf.mxu0
    %184 = vdwg.mxu0
    %v185 = vadd.f32 %v92, %v177
    %v186 = vadd.f32 %v93, %v182
    %187 = vst [vmem:[#allocation2] sm:$0xff] %v185
    %188 = vst [vmem:[#allocation2 + $0x8] sm:$0xff] %v186
    %p189 = scmp.eq.s32.totalorder 0, 0
    %p190 = pnand %p189, %p84
    %p191 = pneg %p190
    // Predicated region
    $region42: #{tpu_custom_call.1} parent=1 // pred_check
      _
    $region43: #{tpu_custom_call.1} parent=1 // pred_check_branch
      %193 = sbr.rel (%p190) target = $region45
    $region44: #{tpu_custom_call.1} parent=1 // pred_region
      %194 = vst [vmem:[#allocation3] sm:$0xff] 0.0
      %195 = vst [vmem:[#allocation3 + $0x8] sm:$0xff] 0.0
    $region45: #{tpu_custom_call.1} parent=1 // pred_fallthru
      _
    // Predicated region
    $region46: #{tpu_custom_call.1} parent=1 // pred_check
      %p196 = pneg %p189
    $region47: #{tpu_custom_call.1} parent=1 // pred_check_branch
      %198 = sbr.rel (%p196) target = $region49
    $region48: #{tpu_custom_call.1} parent=1 // pred_region
      %v199 = vld [vmem:[#allocation3] sm:$0xff]
      %v200 = vld [vmem:[#allocation3 + $0x8] sm:$0xff]
      %v201 = vld [vmem:[#allocation9] sm:$0xff]
      %v202 = vld [vmem:[#allocation9 + $0x8] sm:$0xff]
      %v203 = vld [vmem:[#allocation9 + $0x10] sm:$0xff]
      %v204 = vld [vmem:[#allocation9 + $0x18] sm:$0xff]
      %v205 = vld [vmem:[#allocation9 + $0x20] sm:$0xff]
      %v206 = vld [vmem:[#allocation9 + $0x28] sm:$0xff]
      %v207 = vld [vmem:[#allocation9 + $0x30] sm:$0xff]
      %v208 = vld [vmem:[#allocation9 + $0x38] sm:$0xff]
      %v209 = vld [vmem:[#allocation9 + $0x40] sm:$0xff]
      %v210 = vld [vmem:[#allocation9 + $0x48] sm:$0xff]
      %v211 = vld [vmem:[#allocation9 + $0x50] sm:$0xff]
      %v212 = vld [vmem:[#allocation9 + $0x58] sm:$0xff]
      %v213 = vld [vmem:[#allocation9 + $0x60] sm:$0xff]
      %v214 = vld [vmem:[#allocation9 + $0x68] sm:$0xff]
      %v215 = vld [vmem:[#allocation9 + $0x70] sm:$0xff]
      %v216 = vld [vmem:[#allocation9 + $0x78] sm:$0xff]
      %217 = vmatprep.subr.mxu0 0.0
      %218 = vmatpush1.msra.mxu0 %v216
      %219 = vmatprep.subr.mxu0 0.0
      %220 = vmatpush1.msra.mxu0 %v215
      %221 = vmatprep.subr.mxu0 0.0
      %222 = vmatpush1.msra.mxu0 %v214
      %223 = vmatprep.subr.mxu0 0.0
      %224 = vmatpush1.msra.mxu0 %v213
      %225 = vmatprep.subr.mxu0 0.0
      %226 = vmatpush1.msra.mxu0 %v212
      %227 = vmatprep.subr.mxu0 0.0
      %228 = vmatpush1.msra.mxu0 %v211
      %229 = vmatprep.subr.mxu0 0.0
      %230 = vmatpush1.msra.mxu0 %v210
      %231 = vmatprep.subr.mxu0 0.0
      %232 = vmatpush1.msra.mxu0 %v209
      %233 = vmatprep.subr.mxu0 0.0
      %234 = vmatpush1.msra.mxu0 %v208
      %235 = vmatprep.subr.mxu0 0.0
      %236 = vmatpush1.msra.mxu0 %v207
      %237 = vmatprep.subr.mxu0 0.0
      %238 = vmatpush1.msra.mxu0 %v206
      %239 = vmatprep.subr.mxu0 0.0
      %240 = vmatpush1.msra.mxu0 %v205
      %241 = vmatprep.subr.mxu0 0.0
      %242 = vmatpush1.msra.mxu0 %v204
      %243 = vmatprep.subr.mxu0 0.0
      %244 = vmatpush1.msra.mxu0 %v203
      %245 = vmatprep.subr.mxu0 0.0
      %246 = vmatpush1.msra.mxu0 %v202
      %247 = vmatprep.subr.mxu0 0.0
      %248 = vmatpush1.msra.mxu0 %v201
      %249 = vmatprep.subr.mxu0 0.0
      %250 = vmatpush2.msra.mxu0 0.0
      %251 = vmatprep.subr.mxu0 0.0
      %252 = vmatpush2.msra.mxu0 0.0
      %253 = vmatprep.subr.mxu0 0.0
      %254 = vmatpush2.msra.mxu0 0.0
      %255 = vmatprep.subr.mxu0 0.0
      %256 = vmatpush2.msra.mxu0 0.0
      %257 = vmatprep.subr.mxu0 0.0
      %258 = vmatpush2.msra.mxu0 0.0
      %259 = vmatprep.subr.mxu0 0.0
      %260 = vmatpush2.msra.mxu0 0.0
      %261 = vmatprep.subr.mxu0 0.0
      %262 = vmatpush2.msra.mxu0 0.0
      %263 = vmatprep.subr.mxu0 0.0
      %264 = vmatpush2.msra.mxu0 0.0
      %265 = vmatprep.subr.mxu0 0.0
      %266 = vmatpush2.msra.mxu0 0.0
      %267 = vmatprep.subr.mxu0 0.0
      %268 = vmatpush2.msra.mxu0 0.0
      %269 = vmatprep.subr.mxu0 0.0
      %270 = vmatpush2.msra.mxu0 0.0
      %271 = vmatprep.subr.mxu0 0.0
      %272 = vmatpush2.msra.mxu0 0.0
      %273 = vmatprep.subr.mxu0 0.0
      %274 = vmatpush2.msra.mxu0 0.0
      %275 = vmatprep.subr.mxu0 0.0
      %276 = vmatpush2.msra.mxu0 0.0
      %277 = vmatprep.subr.mxu0 0.0
      %278 = vmatpush2.msra.mxu0 0.0
      %279 = vmatprep.subr.mxu0 0.0
      %280 = vmatpush2.msra.mxu0 0.0
      %281 = vmatprep.mubr.f32.mxu0 0.0
      %282 = vmatmul.mubr.f32.gmra.mxu0 %v90
      %v283 = vpop.f32.mrf.mxu0
      %v284 = vadd.f32 0.0, %v283
      %v285 = vpop.f32.mrf.mxu0
      %286 = vmatprep.mubr.f32.mxu0 0.0
      %287 = vmatmul.mubr.f32.gmra.mxu0 %v91
      %v288 = vpop.f32.mrf.mxu0
      %v289 = vadd.f32 0.0, %v288
      %v290 = vpop.f32.mrf.mxu0
      %291 = vdwg.mxu0
      %v292 = vadd.f32 %v199, %v284
      %v293 = vadd.f32 %v200, %v289
      %294 = vst [vmem:[#allocation3] sm:$0xff] %v292
      %295 = vst [vmem:[#allocation3 + $0x8] sm:$0xff] %v293
    $region49: #{tpu_custom_call.1} parent=1 // pred_fallthru
      _
    // Predicated region
    $region50: #{tpu_custom_call.1} parent=1 // pred_check
      %p296 = pneg %p84
    $region51: #{tpu_custom_call.1} parent=1 // pred_check_branch
      %298 = sbr.rel (%p296) target = $region53
    $region52: #{tpu_custom_call.1} parent=1 // pred_region
      %v299 = vld [vmem:[#allocation3] sm:$0xff]
      %v300 = vld [vmem:[#allocation3 + $0x8] sm:$0xff]
      %v301 = vld [vmem:[#allocation10] sm:$0xff]
      %v302 = vld [vmem:[#allocation10 + $0x8] sm:$0xff]
      %v303 = vld [vmem:[#allocation10 + $0x10] sm:$0xff]
      %v304 = vld [vmem:[#allocation10 + $0x18] sm:$0xff]
      %v305 = vld [vmem:[#allocation10 + $0x20] sm:$0xff]
      %v306 = vld [vmem:[#allocation10 + $0x28] sm:$0xff]
      %v307 = vld [vmem:[#allocation10 + $0x30] sm:$0xff]
      %v308 = vld [vmem:[#allocation10 + $0x38] sm:$0xff]
      %v309 = vld [vmem:[#allocation10 + $0x40] sm:$0xff]
      %v310 = vld [vmem:[#allocation10 + $0x48] sm:$0xff]
      %v311 = vld [vmem:[#allocation10 + $0x50] sm:$0xff]
      %v312 = vld [vmem:[#allocation10 + $0x58] sm:$0xff]
      %v313 = vld [vmem:[#allocation10 + $0x60] sm:$0xff]
      %v314 = vld [vmem:[#allocation10 + $0x68] sm:$0xff]
      %v315 = vld [vmem:[#allocation10 + $0x70] sm:$0xff]
      %v316 = vld [vmem:[#allocation10 + $0x78] sm:$0xff]
      %317 = vmatprep.subr.mxu0 0.0
      %318 = vmatpush1.msra.mxu0 %v316
      %319 = vmatprep.subr.mxu0 0.0
      %320 = vmatpush1.msra.mxu0 %v315
      %321 = vmatprep.subr.mxu0 0.0
      %322 = vmatpush1.msra.mxu0 %v314
      %323 = vmatprep.subr.mxu0 0.0
      %324 = vmatpush1.msra.mxu0 %v313
      %325 = vmatprep.subr.mxu0 0.0
      %326 = vmatpush1.msra.mxu0 %v312
      %327 = vmatprep.subr.mxu0 0.0
      %328 = vmatpush1.msra.mxu0 %v311
      %329 = vmatprep.subr.mxu0 0.0
      %330 = vmatpush1.msra.mxu0 %v310
      %331 = vmatprep.subr.mxu0 0.0
      %332 = vmatpush1.msra.mxu0 %v309
      %333 = vmatprep.subr.mxu0 0.0
      %334 = vmatpush1.msra.mxu0 %v308
      %335 = vmatprep.subr.mxu0 0.0
      %336 = vmatpush1.msra.mxu0 %v307
      %337 = vmatprep.subr.mxu0 0.0
      %338 = vmatpush1.msra.mxu0 %v306
      %339 = vmatprep.subr.mxu0 0.0
      %340 = vmatpush1.msra.mxu0 %v305
      %341 = vmatprep.subr.mxu0 0.0
      %342 = vmatpush1.msra.mxu0 %v304
      %343 = vmatprep.subr.mxu0 0.0
      %344 = vmatpush1.msra.mxu0 %v303
      %345 = vmatprep.subr.mxu0 0.0
      %346 = vmatpush1.msra.mxu0 %v302
      %347 = vmatprep.subr.mxu0 0.0
      %348 = vmatpush1.msra.mxu0 %v301
      %349 = vmatprep.subr.mxu0 0.0
      %350 = vmatpush2.msra.mxu0 0.0
      %351 = vmatprep.subr.mxu0 0.0
      %352 = vmatpush2.msra.mxu0 0.0
      %353 = vmatprep.subr.mxu0 0.0
      %354 = vmatpush2.msra.mxu0 0.0
      %355 = vmatprep.subr.mxu0 0.0
      %356 = vmatpush2.msra.mxu0 0.0
      %357 = vmatprep.subr.mxu0 0.0
      %358 = vmatpush2.msra.mxu0 0.0
      %359 = vmatprep.subr.mxu0 0.0
      %360 = vmatpush2.msra.mxu0 0.0
      %361 = vmatprep.subr.mxu0 0.0
      %362 = vmatpush2.msra.mxu0 0.0
      %363 = vmatprep.subr.mxu0 0.0
      %364 = vmatpush2.msra.mxu0 0.0
      %365 = vmatprep.subr.mxu0 0.0
      %366 = vmatpush2.msra.mxu0 0.0
      %367 = vmatprep.subr.mxu0 0.0
      %368 = vmatpush2.msra.mxu0 0.0
      %369 = vmatprep.subr.mxu0 0.0
      %370 = vmatpush2.msra.mxu0 0.0
      %371 = vmatprep.subr.mxu0 0.0
      %372 = vmatpush2.msra.mxu0 0.0
      %373 = vmatprep.subr.mxu0 0.0
      %374 = vmatpush2.msra.mxu0 0.0
      %375 = vmatprep.subr.mxu0 0.0
      %376 = vmatpush2.msra.mxu0 0.0
      %377 = vmatprep.subr.mxu0 0.0
      %378 = vmatpush2.msra.mxu0 0.0
      %379 = vmatprep.subr.mxu0 0.0
      %380 = vmatpush2.msra.mxu0 0.0
      %381 = vmatprep.mubr.f32.mxu0 0.0
      %382 = vmatmul.mubr.f32.gmra.mxu0 %v299
      %v383 = vpop.f32.mrf.mxu0
      %v384 = vadd.f32 0.0, %v383
      %v385 = vpop.f32.mrf.mxu0
      %386 = vmatprep.mubr.f32.mxu0 0.0
      %387 = vmatmul.mubr.f32.gmra.mxu0 %v300
      %v388 = vpop.f32.mrf.mxu0
      %v389 = vadd.f32 0.0, %v388
      %v390 = vpop.f32.mrf.mxu0
      %391 = vdwg.mxu0
      %v392 = vld [vmem:[#allocation2] sm:$0xff]
      %v393 = vld [vmem:[#allocation2 + $0x8] sm:$0xff]
      %v394 = vld [vmem:[%s2] sm:$0x1]
      %v396 = vlaneseq
      %v397 = vshrl.u32 %v396, 7
      %v398 = vsub.s32 0, %v397
      %v399 = vrot.slane %v394, %v398
      %v401 = vadd.f32 %v392, %v399
      %v402 = vadd.f32 %v393, %v399
      %v403 = vadd.f32 %v401, %v384
      %v404 = vadd.f32 %v402, %v389
      %405 = vst [vmem:[#allocation12] sm:$0xff] %v403
      %406 = vst [vmem:[#allocation12 + $0x8] sm:$0xff] %v404
    $region53: #{tpu_custom_call.1} parent=1 // pred_fallthru
      _
    // Predicated region
    $region54: #{tpu_custom_call.1} parent=1 // pred_check
      _
    $region55: #{tpu_custom_call.1} parent=1 // pred_check_branch
      %408 = sbr.rel (0) target = $region57
    $region56: #{tpu_custom_call.1} parent=1 // pred_region
      %s410 = ssub.s32 256, 256
      %411 = vsyncadd [#allocation6], %s410
      %s412 = sshll.u32 [#allocation12], 4
      %s413 = int_to_ptr.vmem [resolvable:$true] %s412
      %418 = dma.vmem_to_hbm [thread:$0]  %s413, 256, %s5, [#allocation6], 128, 128, 8
    $region57: #{tpu_custom_call.1} parent=1 // pred_fallthru
      _
    // Predicated region
    $region58: #{tpu_custom_call.1} parent=1 // pred_check
      _
    $region59: #{tpu_custom_call.1} parent=1 // pred_check_branch
      %420 = sbr.rel (0) target = $region61
    $region60: #{tpu_custom_call.1} parent=1 // pred_region
      %421 = dma.done [#allocation6], 256
    $region61: #{tpu_custom_call.1} parent=1 // pred_fallthru
      _
    %422 = vsyncpa [#allocation5], 1
    %423 = vsyncpa [#allocation8], 1
    %424 = vsyncpa [#allocation11], 1
    %425 = vsyncpa [#allocation6], 1

</llo_original>
